<compile_context>
chip_gen: v7x
topology: tpu7x:2x2x1
jax: 0.10.0
libtpu: 0.0.40
codegen_flags: <defaults>
</compile_context>

<pallas_src>
import jax
import jax.numpy as jnp
from jax import lax
from jax.experimental import pallas as pl
from jax.experimental.pallas import tpu as pltpu


def _input_proj_kernel(x_ref, wt_ref, b_ref, o_ref):
    """1x1-conv block: out[t, l, h] = sum_c x[t, c, l] * wt[c, h] + b[h].

    x_ref : (TB, C, TL)  input dtype (typically f32; cast to bf16 in-kernel)
    wt_ref: (C, H)       compute dtype (W transposed; resident across the grid)
    b_ref : (1, H)       float32
    o_ref : (TB, TL, H)  output dtype (lane-dense: H is the minor dim)
    """
    wt = wt_ref[...]                                     # (C, H) compute dtype
    bias = b_ref[...]                                    # (1, H) f32

    @pl.loop(0, x_ref.shape[0])                          # in-kernel loop over packed batch elems
    def _(t):
        acc = lax.dot_general(
            x_ref[t].astype(wt.dtype), wt,               # cast on the VMEM tile, not in HBM
            dimension_numbers=(((0,), (0,)), ((), ())),  # contract C (sublanes) on the MXU
            preferred_element_type=jnp.float32,
        )                                                # (TL, H) f32 accumulation
        o_ref[t] = (acc + bias).astype(o_ref.dtype)


def _vmem_capacity_bytes():
    try:
        return int(pltpu.get_tpu_info().vmem_capacity_bytes)
    except Exception:
        return 64 * 1024 * 1024                          # conservative (v7x-sized)


def _pick_l_tile(L, target):
    """Lane-aligned L tile <= target when possible; bounded even for awkward L."""
    if L % 128 == 0:
        if L <= target:
            return L
        for tl in range(target, 127, -128):              # largest multiple-of-128 divisor
            if L % tl == 0:
                return tl
        return 128                                       # unreachable (128 divides L)
    if L < 256:
        return L                                         # full dim (exempt from 128-lane rule)
    # Large, non-multiple-of-128 L: bounded lane-aligned tile + cdiv grid (masked remainder).
    return min(target, 128 * (L // 128))


def input_proj_conv1x1(x, w, b, *, compute_dtype=jnp.bfloat16, out_dtype=None):
    """1x1 Conv1d over channels as a Pallas TPU kernel.

    x: (BN, C, L)    channels-first input (PyTorch Conv1d layout)
    w: (H, C)        Conv1d weight with its size-1 tap squeezed
    b: (H,) or (H,1) bias
    returns: (BN, L, H) token-major output (transformer-native layout; bf16 by default).
             Use jnp.swapaxes(out, 1, 2) for PyTorch Conv1d's (BN, H, L).
    """
    BN, C, L = x.shape
    H = w.shape[0]
    if out_dtype is None:
        out_dtype = compute_dtype                        # bf16 output: halves store bytes

    # Only the (tiny) weight is cast at the boundary; x stays untouched in HBM.
    wtc = w.astype(compute_dtype).T                      # (C, H)
    b2 = b.astype(jnp.float32).reshape(1, H)

    # Rare tiny-C path only (production channel counts are multiples of 8): pad the
    # contraction dim with zeros so the MXU contraction stays sublane-aligned.
    xp = x
    if C % 8:
        pad = 8 - C % 8
        xp = jnp.pad(xp, ((0, 0), (0, pad), (0, 0)))
        wtc = jnp.pad(wtc, ((0, pad), (0, 0)))
        C = C + pad

    # Generation-aware budgets: 128-MiB-VMEM parts (v5e/v6e) vs 64-MiB v7x.
    vmem_cap = _vmem_capacity_bytes()
    if vmem_cap >= 100 * 1024 * 1024:
        block_budget, tl_target, vmem_cap_limit = 48 << 20, 1024, 96 << 20
    else:
        block_budget, tl_target, vmem_cap_limit = 24 << 20, 512, 48 << 20

    TL = _pick_l_tile(L, tl_target)
    # Megacore guard for batch-1 shapes: ensure at least 2 L blocks when cheap to do so.
    if BN == 1 and TL == L and L % 256 == 0:
        TL = L // 2

    # Pack batch elements per grid step, driven by the VMEM budget (double-buffered).
    x_item = jnp.dtype(xp.dtype).itemsize
    o_item = jnp.dtype(out_dtype).itemsize
    c_item = jnp.dtype(compute_dtype).itemsize
    per_elem = TL * (C * x_item + H * o_item)
    w_bytes = C * H * c_item
    max_tb = max(1, (block_budget - w_bytes) // max(1, 2 * per_elem))
    TB = int(min(BN, 64, max_tb))
    while BN % TB:
        TB -= 1

    n_l = int(pl.cdiv(L, TL))
    # Megacore guard: keep >= 2 parallel grid steps whenever possible (v7x has 2 TCs).
    while TB > 1 and (BN // TB) * n_l < 2:
        TB -= 1
        while BN % TB:
            TB -= 1
    n_b = BN // TB

    if n_l > n_b:                                        # larger parallel extent first
        grid = (n_l, n_b)
        x_map = lambda j, i: (i, 0, j)
        o_map = lambda j, i: (i, j, 0)
    else:
        grid = (n_b, n_l)
        x_map = lambda i, j: (i, 0, j)
        o_map = lambda i, j: (i, j, 0)

    x_block_bytes = TB * C * TL * x_item
    o_block_bytes = TB * TL * H * o_item
    needed = 2 * (x_block_bytes + o_block_bytes) + 2 * (w_bytes + 4 * H) + (4 << 20)
    vmem_limit = int(min(vmem_cap_limit, max(32 << 20, needed)))

    return pl.pallas_call(
        _input_proj_kernel,
        out_shape=jax.ShapeDtypeStruct((BN, L, H), out_dtype),
        grid_spec=pl.GridSpec(
            grid=grid,
            in_specs=[
                pl.BlockSpec((TB, C, TL), x_map),            # x tile (native dtype)
                pl.BlockSpec((C, H), lambda i, j: (0, 0)),   # W^T, resident
                pl.BlockSpec((1, H), lambda i, j: (0, 0)),   # bias, resident
            ],
            out_specs=pl.BlockSpec((TB, TL, H), o_map),
        ),
        compiler_params=pltpu.CompilerParams(
            dimension_semantics=("parallel", "parallel"),
            vmem_limit_bytes=vmem_limit,
        ),
    )(xp, wtc, b2)


def tranmodel_forward(x_bncl, w, b):
    """Tranmodel.forward: rearrange -> backbone -> input_proj -> transformer."""
    B, N, C, L = x_bncl.shape
    x = x_bncl.reshape(B * N, C, L)        # rearrange 'b n c l -> (b n) c l'
    src = x                                # TODO(synk): backbone is an external nn.Module; identity stub here.
    src = input_proj_conv1x1(src, w, b)    # nn.Conv1d(C, hidden_dim, kernel_size=1) as a Pallas kernel
    # TODO(synk): transformer is an external nn.Module; identity stub here.  The kernel emits
    # token-major (BN, L, hidden) — the layout a DETR-style transformer consumes — instead of
    # Conv1d's (BN, hidden, L), avoiding an extra full-HBM transpose pass.
    return src


if __name__ == "__main__":
    # --- 1) small-shape check (tiny-C pad path, batch packing, masked small-H stores) ---
    B, N, C, L = 2, 2, 4, 16
    HIDDEN = 32

    key = jax.random.PRNGKey(0)
    kx, kw, kb = jax.random.split(key, 3)
    x = jax.random.normal(kx, (B, N, C, L), dtype=jnp.float32)
    w = jax.random.normal(kw, (HIDDEN, C), dtype=jnp.float32) * 0.1
    b = jax.random.normal(kb, (HIDDEN,), dtype=jnp.float32) * 0.1

    out = jax.block_until_ready(tranmodel_forward(x, w, b))
    assert out.shape == (B * N, L, HIDDEN), out.shape

    # Reference on bf16-cast inputs (kernel: bf16 inputs, f32 accumulate, bf16 output).
    xf = x.reshape(B * N, C, L).astype(jnp.bfloat16).astype(jnp.float32)
    wf = w.astype(jnp.bfloat16).astype(jnp.float32)
    ref = jnp.einsum("hc,bcl->blh", wf, xf) + b[None, None, :]
    err = float(jnp.max(jnp.abs(out.astype(jnp.float32) - ref)))
    assert jnp.allclose(out.astype(jnp.float32), ref, atol=2e-2, rtol=2e-2), err

    # --- 2) lane-aligned tiles / larger-C MXU usage ---
    BN2, C2, L2, H2 = 2, 256, 256, 128
    k1, k2, k3 = jax.random.split(jax.random.PRNGKey(1), 3)
    x2 = jax.random.normal(k1, (BN2, C2, L2), dtype=jnp.float32)
    w2 = jax.random.normal(k2, (H2, C2), dtype=jnp.float32) * 0.05
    b2 = jax.random.normal(k3, (H2,), dtype=jnp.float32) * 0.05

    out2 = jax.block_until_ready(input_proj_conv1x1(x2, w2, b2))
    x2f = x2.astype(jnp.bfloat16).astype(jnp.float32)
    w2f = w2.astype(jnp.bfloat16).astype(jnp.float32)
    ref2 = jnp.einsum("hc,bcl->blh", w2f, x2f) + b2[None, None, :]
    assert out2.shape == (BN2, L2, H2), out2.shape
    err2 = float(jnp.max(jnp.abs(out2.astype(jnp.float32) - ref2)))
    assert jnp.allclose(out2.astype(jnp.float32), ref2, atol=5e-2, rtol=5e-2), err2

    # --- 3) multi-block L tiling path ---
    BN3, C3, L3, H3 = 2, 16, 1280, 128
    k4, k5, k6 = jax.random.split(jax.random.PRNGKey(2), 3)
    x3 = jax.random.normal(k4, (BN3, C3, L3), dtype=jnp.float32)
    w3 = jax.random.normal(k5, (H3, C3), dtype=jnp.float32) * 0.1
    b3 = jax.random.normal(k6, (H3,), dtype=jnp.float32) * 0.1

    out3 = jax.block_until_ready(input_proj_conv1x1(x3, w3, b3))
    x3f = x3.astype(jnp.bfloat16).astype(jnp.float32)
    w3f = w3.astype(jnp.bfloat16).astype(jnp.float32)
    ref3 = jnp.einsum("hc,bcl->blh", w3f, x3f) + b3[None, None, :]
    err3 = float(jnp.max(jnp.abs(out3.astype(jnp.float32) - ref3)))
    assert jnp.allclose(out3.astype(jnp.float32), ref3, atol=5e-2, rtol=5e-2), err3

    print("KERNEL_OK")
</pallas_src>

<mosaic_0001>
module attributes {stable_mosaic.version = 11 : i64} {
  func.func @_input_proj_kernel(%arg0: i32, %arg1: i32, %arg2: memref<2x8x16xf32, #tpu.memory_space<vmem>>, %arg3: memref<8x32xbf16, #tpu.memory_space<vmem>>, %arg4: memref<1x32xf32, #tpu.memory_space<vmem>>, %arg5: memref<2x16x32xbf16, #tpu.memory_space<vmem>>) attributes {dimension_semantics = [#tpu.dimension_semantics<parallel>, #tpu.dimension_semantics<parallel>], iteration_bounds = array<i64: 2, 1>, scalar_prefetch = 0 : i64, scratch_operands = 0 : i64, tpu.core_type = #tpu.core_type<tc>, window_params = [{transform_indices = @transform_0, window_bounds = array<i64: 2, 8, 16>}, {pipeline_mode = #tpu.pipeline_mode<synchronous>, transform_indices = @transform_1, window_bounds = array<i64: 8, 32>}, {pipeline_mode = #tpu.pipeline_mode<synchronous>, transform_indices = @transform_2, window_bounds = array<i64: 1, 32>}, {transform_indices = @transform_3, window_bounds = array<i64: 2, 16, 32>}]} {
    %c0 = arith.constant 0 : index
    %c0_0 = arith.constant 0 : index
    %0 = vector.load %arg3[%c0, %c0_0] : memref<8x32xbf16, #tpu.memory_space<vmem>>, vector<8x32xbf16>
    %c0_1 = arith.constant 0 : index
    %c0_2 = arith.constant 0 : index
    %1 = vector.load %arg4[%c0_1, %c0_2] : memref<1x32xf32, #tpu.memory_space<vmem>>, vector<1x32xf32>
    %c0_i32 = arith.constant 0 : i32
    %c2_i32 = arith.constant 2 : i32
    %2 = arith.addi %c0_i32, %c2_i32 : i32
    %c1_i32 = arith.constant 1 : i32
    scf.for %arg6 = %c0_i32 to %2 step %c1_i32  : i32 {
      %c1_i32_4 = arith.constant 1 : i32
      %3 = arith.muli %arg6, %c1_i32_4 : i32
      %c0_i32_5 = arith.constant 0 : i32
      %4 = arith.addi %c0_i32_5, %3 : i32
      %5 = arith.index_cast %4 : i32 to index
      %c0_6 = arith.constant 0 : index
      %c0_7 = arith.constant 0 : index
      %6 = vector.load %arg2[%5, %c0_6, %c0_7] : memref<2x8x16xf32, #tpu.memory_space<vmem>>, vector<1x8x16xf32>
      %7 = vector.shape_cast %6 : vector<1x8x16xf32> to vector<8x16xf32>
      %8 = arith.truncf %7 : vector<8x16xf32> to vector<8x16xbf16>
      %cst = arith.constant dense<0.000000e+00> : vector<16x32xf32>
      %9 = tpu.matmul %8, %0, %cst {dimension_numbers = #tpu.dot_dimension_numbers<[0], [0], [1], [1], [0, 1, 1, 1], [], []>} : vector<8x16xbf16>, vector<8x32xbf16>, vector<16x32xf32> -> vector<16x32xf32>
      %10 = vector.broadcast %1 : vector<1x32xf32> to vector<16x32xf32>
      %11 = arith.addf %9, %10 : vector<16x32xf32>
      %12 = arith.truncf %11 : vector<16x32xf32> to vector<16x32xbf16>
      %13 = arith.index_cast %4 : i32 to index
      %c0_8 = arith.constant 0 : index
      %c0_9 = arith.constant 0 : index
      %14 = vector.load %arg5[%13, %c0_8, %c0_9] : memref<2x16x32xbf16, #tpu.memory_space<vmem>>, vector<1x16x32xbf16>
      %15 = vector.shape_cast %14 : vector<1x16x32xbf16> to vector<16x32xbf16>
      %16 = vector.shape_cast %12 : vector<16x32xbf16> to vector<1x16x32xbf16>
      tpu.vector_store %arg5[%13, %c0_8, %c0_9], %16 {strides = array<i32>} : memref<2x16x32xbf16, #tpu.memory_space<vmem>>, vector<1x16x32xbf16>,
    }
    %c2_i32_3 = arith.constant 2 : i32
    return
  }
  func.func @transform_0(%arg0: i32, %arg1: i32) -> (i32, i32, i32) {
    %c0_i32 = arith.constant 0 : i32
    %c0_i32_0 = arith.constant 0 : i32
    return %arg0, %c0_i32, %arg1 : i32, i32, i32
  }
  func.func @transform_1(%arg0: i32, %arg1: i32) -> (i32, i32) {
    %c0_i32 = arith.constant 0 : i32
    %c0_i32_0 = arith.constant 0 : i32
    %c0_i32_1 = arith.constant 0 : i32
    return %c0_i32, %c0_i32_0 : i32, i32
  }
  func.func @transform_2(%arg0: i32, %arg1: i32) -> (i32, i32) {
    %c0_i32 = arith.constant 0 : i32
    %c0_i32_0 = arith.constant 0 : i32
    %c0_i32_1 = arith.constant 0 : i32
    return %c0_i32, %c0_i32_0 : i32, i32
  }
  func.func @transform_3(%arg0: i32, %arg1: i32) -> (i32, i32, i32) {
    %c0_i32 = arith.constant 0 : i32
    %c0_i32_0 = arith.constant 0 : i32
    return %arg0, %arg1, %c0_i32 : i32, i32, i32
  }
}

</mosaic_0001>

<llo_original>
// kernel: tpu_custom_call.1
$region0: #{tpu_custom_call.1}
  #allocation0 [shape = 'u32[]', space=smem, size = 0x4, offset = 0x4, fixed_abs, tag = 'smem constant byte address 0x4 - core index']
  #allocation1 [shape = 'u32[144,128]{1,0:T(1,128)}', space=vmem, size = 0x12000, scoped, tag = 'internal scratch']
  %s0 = inlined_call_operand.hbm [shape: f32[4,8,16], index: 0, kind: input, shape index: {}]
  %s1 = inlined_call_operand.hbm [shape: bf16[8,32], index: 1, kind: input, shape index: {}]
  %s2 = inlined_call_operand.vmem [shape: f32[1,32], index: 2, kind: input, shape index: {}]
  %s3 = inlined_call_operand.hbm [shape: bf16[4,16,32], index: 3, kind: output, shape index: {}]
  %s4 = sld [smem:[#allocation0]]
  $region60: #{tpu_custom_call.1} parent=0
    _
  %s6 = ssub.s32 1, %s4
  %s7 = scalar_select 0, %s6, %s4
  $region1: #{tpu_custom_call.1} parent=0
    #allocation2 [shape = 'u8[16384]{0}', space=vmem, size = 0x4000, scoped, tag = 'input window, operand 0']
    #allocation3 [shape = 's32[2]{0}', space=sflag, size = 0x8, scoped, tag = 'scoped memory for tpu_custom_call.1']
    #allocation4 [shape = 's32[2]{0}', space=sflag, size = 0x8, scoped, tag = 'scoped memory for tpu_custom_call.1']
    #allocation5 [shape = 'u8[2048]{0}', space=vmem, size = 0x800, scoped, tag = 'input window, operand 1, single buffered']
    #allocation6 [shape = 's32[1]{0}', space=sflag, size = 0x4, scoped, tag = 'scoped memory for tpu_custom_call.1']
    #allocation7 [shape = 'u8[16384]{0}', space=vmem, size = 0x4000, scoped, tag = 'output window, operand 0']
    %8 = vsyncpa [#allocation3], 0
    %s9 = scalar_lea.sflag [#allocation3], 1
    %10 = vsyncpa %s9, 0
    %11 = vsyncpa [#allocation6], 0
    %12 = vsyncpa [#allocation4], 0
    %s13 = scalar_lea.sflag [#allocation4], 1
    %14 = vsyncpa %s13, 0
    loop: start=0, step=1, limit=4
    $region2: #{tpu_custom_call.1} parent=1 // loop_pre_header
      _
    $region3: #{tpu_custom_call.1} parent=1 // loop_header
      %s16 = sphi 0, %s20
      %p17 = scmp.ge.s32.totalorder %s16, 4
      %s23 = sphi 0, %s35
      %s24 = sphi 0, %s31
      %s25 = sphi 0, %s23
      %s26 = sphi 0, %s24
      %s27 = sphi 0, %s25
      %s28 = sphi 0, %s26
      %s40 = sphi 0, %s42
      %s43 = sphi 0, %s40
      %s44 = sphi 0, %s43
      %s60 = sphi 0, %s44
      %s64 = sphi 0, %s64
      %s66 = sphi 0, %s64
      %s67 = sphi 0, %s66
      %s81 = sphi 0, %s67
      %s85 = sphi 0, %s85
      %s87 = sphi 0, %s85
      %s88 = sphi 0, %s87
      %s102 = sphi 0, %s88
      %s110 = sphi 0, %s112
      %s113 = sphi 0, %s110
      %s114 = sphi 0, %s113
      %s130 = sphi 0, %s114
    $region4: #{tpu_custom_call.1} parent=1 // loop_header_branch
      %19 = sbr.rel (%p17) target = $region8
    $region5: #{tpu_custom_call.1} parent=1 // loop_body
      %s21 = ssub.s32 %s16, 1
      %s22 = ssub.s32 %s16, 2
      %s29 = sadd.s32 1, %s24
      %p30 = scmp.ge.s32.totalorder %s29, 1
      %s31 = scalar_select %p30, 0, %s29
      %s32 = sadd.s32 1, %s23
      %s33 = scalar_select %p30, %s32, %s23
      %p34 = scmp.ge.s32.totalorder %s33, 2
      %s35 = scalar_select %p34, 0, %s33
      %s36 = ssub.s32 %s23, %s35
      %s37 = ssub.s32 %s24, %s31
      %s38 = sor.u32 %s36, %s37
      %p39 = scmp.eq.s32.totalorder %s38, 0
      %s41 = sadd.s32 %s40, 1
      %s42 = scalar_select %p39, %s40, %s41
      %p45 = pneg %p39
      %p46 = scmp.eq.s32.totalorder %s16, 1
      %p47 = por %p45, %p46
      %p48 = scmp.ne.s32.totalorder %s40, %s43
      %p49 = scmp.eq.s32.totalorder %s16, 0
      %p50 = por %p48, %p49
      %p51 = scmp.ne.s32.totalorder %s40, %s43
      %p52 = scmp.eq.s32.totalorder %s21, 1
      %p53 = por %p51, %p52
      %p54 = scmp.ne.s32.totalorder %s43, %s44
      %p55 = scmp.eq.s32.totalorder %s21, 0
      %p56 = por %p54, %p55
      %p57 = scmp.ne.s32.totalorder %s43, %s44
      %p58 = scmp.eq.s32.totalorder %s22, 1
      %p59 = por %p57, %p58
      %p61 = scmp.ne.s32.totalorder %s44, %s60
      %p62 = scmp.eq.s32.totalorder %s22, 0
      %p63 = por %p61, %p62
      %s65 = sadd.s32 %s64, 1
      %p68 = scmp.eq.s32.totalorder %s16, 1
      %p69 = scmp.ne.s32.totalorder %s64, %s66
      %p70 = scmp.eq.s32.totalorder %s16, 0
      %p71 = por %p69, %p70
      %p72 = scmp.ne.s32.totalorder %s64, %s66
      %p73 = scmp.eq.s32.totalorder %s21, 1
      %p74 = por %p72, %p73
      %p75 = scmp.ne.s32.totalorder %s66, %s67
      %p76 = scmp.eq.s32.totalorder %s21, 0
      %p77 = por %p75, %p76
      %p78 = scmp.ne.s32.totalorder %s66, %s67
      %p79 = scmp.eq.s32.totalorder %s22, 1
      %p80 = por %p78, %p79
      %p82 = scmp.ne.s32.totalorder %s67, %s81
      %p83 = scmp.eq.s32.totalorder %s22, 0
      %p84 = por %p82, %p83
      %s86 = sadd.s32 %s85, 1
      %p89 = scmp.eq.s32.totalorder %s16, 1
      %p90 = scmp.ne.s32.totalorder %s85, %s87
      %p91 = scmp.eq.s32.totalorder %s16, 0
      %p92 = por %p90, %p91
      %p93 = scmp.ne.s32.totalorder %s85, %s87
      %p94 = scmp.eq.s32.totalorder %s21, 1
      %p95 = por %p93, %p94
      %p96 = scmp.ne.s32.totalorder %s87, %s88
      %p97 = scmp.eq.s32.totalorder %s21, 0
      %p98 = por %p96, %p97
      %p99 = scmp.ne.s32.totalorder %s87, %s88
      %p100 = scmp.eq.s32.totalorder %s22, 1
      %p101 = por %p99, %p100
      %p103 = scmp.ne.s32.totalorder %s88, %s102
      %p104 = scmp.eq.s32.totalorder %s22, 0
      %p105 = por %p103, %p104
      %s106 = ssub.s32 %s23, %s35
      %s107 = ssub.s32 %s24, %s31
      %s108 = sor.u32 %s106, %s107
      %p109 = scmp.eq.s32.totalorder %s108, 0
      %s111 = sadd.s32 %s110, 1
      %s112 = scalar_select %p109, %s110, %s111
      %p115 = pneg %p109
      %p116 = scmp.eq.s32.totalorder %s16, 1
      %p117 = por %p115, %p116
      %p118 = scmp.ne.s32.totalorder %s110, %s113
      %p119 = scmp.eq.s32.totalorder %s16, 0
      %p120 = por %p118, %p119
      %p121 = scmp.ne.s32.totalorder %s110, %s113
      %p122 = scmp.eq.s32.totalorder %s21, 1
      %p123 = por %p121, %p122
      %p124 = scmp.ne.s32.totalorder %s113, %s114
      %p125 = scmp.eq.s32.totalorder %s21, 0
      %p126 = por %p124, %p125
      %p127 = scmp.ne.s32.totalorder %s113, %s114
      %p128 = scmp.eq.s32.totalorder %s22, 1
      %p129 = por %p127, %p128
      %p131 = scmp.ne.s32.totalorder %s114, %s130
      %p132 = scmp.eq.s32.totalorder %s22, 0
      %p133 = por %p131, %p132
      %p134 = scmp.le.s32.totalorder 1, %s16
      %p135 = scmp.lt.s32.totalorder %s16, 3
      %p136 = pnand %p134, %p135
      %p137 = pneg %p136
      // Predicated region
      $region9: #{tpu_custom_call.1} parent=5 // pred_check
        _
      $region10: #{tpu_custom_call.1} parent=5 // pred_check_branch
        %139 = sbr.rel (%p136) target = $region12
      $region11: #{tpu_custom_call.1} parent=5 // pred_region
        %s140 = ssub.s32 %s16, 1
        // Predicated region
        $region13: #{tpu_custom_call.1} parent=11 // pred_check
          %p141 = pneg %p77
        $region14: #{tpu_custom_call.1} parent=11 // pred_check_branch
          %143 = sbr.rel (%p141) target = $region16
        $region15: #{tpu_custom_call.1} parent=11 // pred_region
          %s145 = ssub.s32 64, 64
          %146 = vsyncadd [#allocation6], %s145
          %s148 = sshll.u32 [#allocation5], 4
          %s149 = int_to_ptr.vmem [resolvable:$true] %s148
          %151 = dma.hbm_to_vmem [thread:$0]  %s1, 64, %s149, [#allocation6]
        $region16: #{tpu_custom_call.1} parent=11 // pred_fallthru
          _
        // Predicated region
        $region17: #{tpu_custom_call.1} parent=11 // pred_check
          %p152 = pneg %p98
        $region18: #{tpu_custom_call.1} parent=11 // pred_check_branch
          %154 = sbr.rel (%p152) target = $region20
        $region19: #{tpu_custom_call.1} parent=11 // pred_region
          _
        $region20: #{tpu_custom_call.1} parent=11 // pred_fallthru
          _
      $region12: #{tpu_custom_call.1} parent=5 // pred_fallthru
        _
      %p155 = scmp.lt.s32.totalorder %s16, 2
      // Predicated region
      $region21: #{tpu_custom_call.1} parent=5 // pred_check
        %p156 = pneg %p155
      $region22: #{tpu_custom_call.1} parent=5 // pred_check_branch
        %158 = sbr.rel (%p156) target = $region24
      $region23: #{tpu_custom_call.1} parent=5 // pred_region
        // Predicated region
        $region25: #{tpu_custom_call.1} parent=23 // pred_check
          %p159 = pneg %p50
        $region26: #{tpu_custom_call.1} parent=23 // pred_check_branch
          %161 = sbr.rel (%p159) target = $region28
        $region27: #{tpu_custom_call.1} parent=23 // pred_region
          %s162 = sand.u32 %s40, 1
          %s163 = scalar_lea.sflag [#allocation3], %s162
          %s164 = sand.u32 %s40, 1
          %s165 = smul.addr %s164, 16
          %s166 = scalar_lea.vmem [#allocation2], %s165
          %s167 = smul.u32 2, %s23
          %s169 = ssub.s32 256, 256
          %170 = vsyncadd %s163, %s169
          %s171 = sadd.s32 %s24, %s167
          %s172 = smul.addr %s171, 128
          %s173 = scalar_lea.hbm %s0, %s172
          %s174 = sshll.u32 %s166, 4
          %s175 = int_to_ptr.vmem [resolvable:$true] %s174
          %180 = dma.hbm_to_vmem [thread:$0]  %s173, 256, %s175, %s163, 128, 128, 8
        $region28: #{tpu_custom_call.1} parent=23 // pred_fallthru
          _
      $region24: #{tpu_custom_call.1} parent=5 // pred_fallthru
        _
      %p181 = scmp.le.s32.totalorder 1, %s16
      %p182 = scmp.lt.s32.totalorder %s16, 3
      %p183 = pnand %p181, %p182
      %p184 = pneg %p183
      // Predicated region
      $region29: #{tpu_custom_call.1} parent=5 // pred_check
        _
      $region30: #{tpu_custom_call.1} parent=5 // pred_check_branch
        %186 = sbr.rel (%p183) target = $region32
      $region31: #{tpu_custom_call.1} parent=5 // pred_region
        %s187 = ssub.s32 %s16, 1
        %s188 = sand.u32 %s43, 1
        %s189 = scalar_lea.sflag [#allocation3], %s188
        %s190 = sand.u32 %s43, 1
        %s191 = smul.addr %s190, 16
        %s192 = scalar_lea.vmem [#allocation2], %s191
        // Predicated region
        $region33: #{tpu_custom_call.1} parent=31 // pred_check
          %p193 = pneg %p56
        $region34: #{tpu_custom_call.1} parent=31 // pred_check_branch
          %195 = sbr.rel (%p193) target = $region36
        $region35: #{tpu_custom_call.1} parent=31 // pred_region
          %196 = dma.done %s189, 256
        $region36: #{tpu_custom_call.1} parent=31 // pred_fallthru
          _
        // Predicated region
        $region37: #{tpu_custom_call.1} parent=31 // pred_check
          %p197 = pneg %p77
        $region38: #{tpu_custom_call.1} parent=31 // pred_check_branch
          %199 = sbr.rel (%p197) target = $region40
        $region39: #{tpu_custom_call.1} parent=31 // pred_region
          %200 = dma.done [#allocation6], 64
        $region40: #{tpu_custom_call.1} parent=31 // pred_fallthru
          _
        %s201 = sand.u32 %s43, 1
        %s202 = scalar_lea.sflag [#allocation3], %s201
        %s203 = sand.u32 %s43, 1
        %s204 = smul.addr %s203, 16
        %s205 = scalar_lea.vmem [#allocation2], %s204
        %p206 = pneg %p56
        %p207 = pneg %p53
        %p208 = pneg %p77
        %p209 = pneg %p74
        %p210 = pneg %p98
        %p211 = pneg %p95
        %p212 = pneg %p126
        %p213 = pneg %p123
        %s214 = sand.u32 %s113, 1
        %s215 = scalar_lea.sflag [#allocation4], %s214
        %s216 = sand.u32 %s113, 1
        %s217 = smul.addr %s216, 16
        %s218 = scalar_lea.vmem [#allocation7], %s217
        %s219 = smul.u32 2, %s25
        %s220 = smul.u32 2, %s25
        %s221 = smul.u32 2, %s26
        %v223 = vld [vmem:[#allocation5] sm:$0xf]
        %v224 = vld [vmem:[%s2] sm:$0x1]
        loop: start=0, step=1, limit=2
        $region41: #{tpu_custom_call.1} parent=31 // loop_pre_header
          _
        $region42: #{tpu_custom_call.1} parent=31 // loop_header
          %s226 = sphi 0, %s230
          %p227 = scmp.ge.s32.totalorder %s226, 2
        $region43: #{tpu_custom_call.1} parent=31 // loop_header_branch
          %229 = sbr.rel (%p227) target = $region47
        $region44: #{tpu_custom_call.1} parent=31 // loop_body
          %s231 = smul.u32 %s226, 8
          %s232 = scalar_lea.vmem %s192, %s231 [#allocation2]
          %v233 = vld [vmem:[%s232] sm:$0xff]
          %v234 = vpack.c.bf16 %v233, %v233
          %v236 = vlaneseq
          %v237 = vshrl.u32 %v236, 7
          %v238 = vsub.s32 0, %v237
          %v239 = vrot.slane %v224, %v238
          %241 = vxpose.xlu0.c.b16.start [1/8] %v234, 128
          %242 = vxpose.xlu0.c.b16.cont [2/8] 0, 128
          %243 = vxpose.xlu0.c.b16.cont [3/8] 0, 128
          %244 = vxpose.xlu0.c.b16.cont [4/8] 0, 128
          %245 = vxpose.xlu0.c.b16.cont [5/8] 0, 128
          %246 = vxpose.xlu0.c.b16.cont [6/8] 0, 128
          %247 = vxpose.xlu0.c.b16.cont [7/8] 0, 128
          %248 = vxpose.xlu0.c.b16.end [8/8] 0, 128
          %v249 = vpop.trf.xlu0
          %v250 = vpop.trf.xlu0
          %v251 = vpop.trf.xlu0
          %v252 = vpop.trf.xlu0
          %v253 = vpop.trf.xlu0
          %v254 = vpop.trf.xlu0
          %v255 = vpop.trf.xlu0
          %v256 = vpop.trf.xlu0
          %vm257 = vcmask 64512
          %v259 = vsel %vm257, %v249, 0
          %vm261 = vcmask 1043456
          %v263 = vsel %vm261, %v223, 0
          %265 = vmatprep.subr.bf16.mxu0 0
          %266 = vmatpush1.bf16.msra.mxu0 %v263
          %267 = vmatprep.subr.bf16.mxu0 0
          %268 = vmatpush1.bf16.msra.mxu0 0
          %269 = vmatprep.subr.bf16.mxu0 0
          %270 = vmatpush1.bf16.msra.mxu0 0
          %271 = vmatprep.subr.bf16.mxu0 0
          %272 = vmatpush1.bf16.msra.mxu0 0
          %273 = vmatprep.subr.bf16.mxu0 0
          %274 = vmatpush1.bf16.msra.mxu0 0
          %275 = vmatprep.subr.bf16.mxu0 0
          %276 = vmatpush1.bf16.msra.mxu0 0
          %277 = vmatprep.subr.bf16.mxu0 0
          %278 = vmatpush1.bf16.msra.mxu0 0
          %279 = vmatprep.subr.bf16.mxu0 0
          %280 = vmatpush1.bf16.msra.mxu0 0
          %281 = vmatprep.subr.bf16.mxu0 0
          %282 = vmatpush1.bf16.msra.mxu0 0
          %283 = vmatprep.subr.bf16.mxu0 0
          %284 = vmatpush1.bf16.msra.mxu0 0
          %285 = vmatprep.subr.bf16.mxu0 0
          %286 = vmatpush1.bf16.msra.mxu0 0
          %287 = vmatprep.subr.bf16.mxu0 0
          %288 = vmatpush1.bf16.msra.mxu0 0
          %289 = vmatprep.subr.bf16.mxu0 0
          %290 = vmatpush1.bf16.msra.mxu0 0
          %291 = vmatprep.subr.bf16.mxu0 0
          %292 = vmatpush1.bf16.msra.mxu0 0
          %293 = vmatprep.subr.bf16.mxu0 0
          %294 = vmatpush1.bf16.msra.mxu0 0
          %295 = vmatprep.subr.bf16.mxu0 0
          %296 = vmatpush1.bf16.msra.mxu0 0
          %297 = vmatprep.mubr.bf16.mxu0 0
          %298 = vmatmul.mubr.bf16.gmra.mrb[0].mxu0 %v259
          %v299 = vpop.f32.mrb[0].mxu0
          %v300 = vadd.f32 %v239, %v299
          %v301 = vpop.f32.mrb[0].mxu0
          %v302 = vpop.f32.mrb[0].mxu0
          %v303 = vadd.f32 %v239, %v302
          %v304 = vpop.f32.mrb[0].mxu0
          %305 = vdwg.mxu0
          %v306 = vpack.c.bf16 %v303, %v300
          %v308 = vunpack.c.l.b16 %v306
          %v309 = vunpack.c.h.b16 %v306
          %v310 = vpack.c.b16 %v308, %v308
          %v311 = vpack.c.b16 %v309, %v309
          %s314 = smul.u32 %s226, 2
          %s315 = smul.addr %s314, 4
          %s316 = scalar_lea.vmem %s218, %s315 [#allocation7]
          %vm317 = vcmask 257024
          %318 = vst.msk [vmem:[%s316] sm:$0xf] %vm317, %v310
          %319 = vst.msk [vmem:[%s316 + $0x4] sm:$0xf] %vm317, %v311
        $region45: #{tpu_custom_call.1} parent=31 // loop_footer
          %s230 = sadd.s32 1, %s226
        $region46: #{tpu_custom_call.1} parent=31 // loop_footer_branch
          %225 = sbr.rel target = $region42
        $region47: #{tpu_custom_call.1} parent=31 // loop_exit
          _
        %s320 = sand.u32 %s113, 1
        %s321 = scalar_lea.sflag [#allocation4], %s320
        %s322 = sand.u32 %s113, 1
        %s323 = smul.addr %s322, 16
        %s324 = scalar_lea.vmem [#allocation7], %s323
        // Predicated region
        $region48: #{tpu_custom_call.1} parent=31 // pred_check
          %p325 = pneg %p123
        $region49: #{tpu_custom_call.1} parent=31 // pred_check_branch
          %327 = sbr.rel (%p325) target = $region51
        $region50: #{tpu_custom_call.1} parent=31 // pred_region
          %s328 = smul.u32 2, %s25
          %s329 = smul.u32 2, %s26
          %s331 = ssub.s32 256, 256
          %332 = vsyncadd %s321, %s331
          %s333 = smul.addr %s328, 2
          %s334 = sadd.s32 %s329, %s333
          %s335 = smul.addr %s334, 64
          %s336 = scalar_lea.hbm %s3, %s335
          %s337 = sshll.u32 %s324, 4
          %s338 = int_to_ptr.vmem [resolvable:$true] %s337
          %343 = dma.vmem_to_hbm [thread:$0]  %s338, 256, %s336, %s321, 64, 64, 4
        $region51: #{tpu_custom_call.1} parent=31 // pred_fallthru
          _
      $region32: #{tpu_custom_call.1} parent=5 // pred_fallthru
        _
      %p344 = scmp.le.s32.totalorder 2, %s16
      // Predicated region
      $region52: #{tpu_custom_call.1} parent=5 // pred_check
        %p345 = pneg %p344
      $region53: #{tpu_custom_call.1} parent=5 // pred_check_branch
        %347 = sbr.rel (%p345) target = $region55
      $region54: #{tpu_custom_call.1} parent=5 // pred_region
        %s348 = ssub.s32 %s16, 2
        // Predicated region
        $region56: #{tpu_custom_call.1} parent=54 // pred_check
          %p349 = pneg %p129
        $region57: #{tpu_custom_call.1} parent=54 // pred_check_branch
          %351 = sbr.rel (%p349) target = $region59
        $region58: #{tpu_custom_call.1} parent=54 // pred_region
          %s352 = sand.u32 %s114, 1
          %s353 = scalar_lea.sflag [#allocation4], %s352
          %s354 = sand.u32 %s114, 1
          %s355 = smul.addr %s354, 16
          %s356 = scalar_lea.vmem [#allocation7], %s355
          %357 = dma.done %s353, 256
        $region59: #{tpu_custom_call.1} parent=54 // pred_fallthru
          _
      $region55: #{tpu_custom_call.1} parent=5 // pred_fallthru
        _
    $region6: #{tpu_custom_call.1} parent=1 // loop_footer
      %s20 = sadd.s32 1, %s16
    $region7: #{tpu_custom_call.1} parent=1 // loop_footer_branch
      %15 = sbr.rel target = $region3
    $region8: #{tpu_custom_call.1} parent=1 // loop_exit
      _
    %358 = vsyncpa [#allocation3], 1
    %s359 = scalar_lea.sflag [#allocation3], 1
    %360 = vsyncpa %s359, 1
    %361 = vsyncpa [#allocation6], 1
    %362 = vsyncpa [#allocation4], 1
    %s363 = scalar_lea.sflag [#allocation4], 1
    %364 = vsyncpa %s363, 1

</llo_original>
